<compile_context>
chip_gen: v5e
topology: v5e:2x2
jax: 0.10.0
libtpu: 0.0.40
codegen_flags: <defaults>
</compile_context>

<pallas_src>
import functools

import jax
import jax.numpy as jnp
from jax import lax
from jax.experimental import pallas as pl
from jax.experimental.pallas import tpu as pltpu

TAU = 0.2          # temperature from DistDistLoss.__init__
PDIST_EPS = 1e-6   # torch.nn.functional.pairwise_distance default eps
_MASK = -1e30      # additive mask for lane-padded centroid columns


def _round_up(x, m):
    return (x + m - 1) // m * m


def _distdist_kernel(f_ref, c1t_ref, c2t_ref, out_ref,
                     n1_ref, n2_ref, acc_ref,
                     *, n_valid, k1, k2, tm, tau):
    i = pl.program_id(0)

    # ---- step 0: build L2-normalized soft-assignment vectors once ----------
    @pl.when(i == 0)
    def _init():
        inv_tau = jnp.float32(1.0 / tau)
        f = f_ref[...].astype(jnp.float32) * inv_tau            # (Np, D)

        def write_normed(ct_ref, k, n_out_ref):
            # Centroids arrive pre-transposed as (D, Kp): no in-kernel .T.
            logits = jnp.dot(f, ct_ref[...].astype(jnp.float32),
                             preferred_element_type=jnp.float32)  # (Np, Kp)
            col = lax.broadcasted_iota(jnp.int32, logits.shape, 1)
            valid = col < k
            logits = jnp.where(valid, logits, jnp.float32(_MASK))
            m = jnp.max(logits, axis=-1, keepdims=True)
            e = jnp.where(valid, jnp.exp(logits - m), 0.0)
            # normalize(softmax(x)) == exp(x - max) / ||exp(x - max)||_2
            rnorm = lax.rsqrt(jnp.sum(e * e, axis=-1, keepdims=True))
            n_out_ref[...] = e * rnorm

        write_normed(c1t_ref, k1, n1_ref)
        write_normed(c2t_ref, k2, n2_ref)
        acc_ref[...] = jnp.zeros_like(acc_ref)

    # ---- every step: one row tile of the fused (d1 - d2) reduction ---------
    row0 = pl.multiple_of(i * tm, tm)
    n1t = n1_ref[pl.ds(row0, tm), :]                   # (TM, Kp1)
    n2t = n2_ref[pl.ds(row0, tm), :]                   # (TM, Kp2)
    dn = (((1,), (1,)), ((), ()))                      # contract on K
    g1 = lax.dot_general(n1t, n1_ref[...], dn,
                         preferred_element_type=jnp.float32)      # (TM, Np)
    g2 = lax.dot_general(n2t, n2_ref[...], dn,
                         preferred_element_type=jnp.float32)      # (TM, Np)
    # d1 - d2 = (1 - g1) - (1 - g2) = g2 - g1   (d1/d2 never materialized)
    diff = (g2 - g1) + jnp.float32(PDIST_EPS)

    rows = row0 + lax.broadcasted_iota(jnp.int32, diff.shape, 0)
    cols = lax.broadcasted_iota(jnp.int32, diff.shape, 1)
    keep = (rows < n_valid) & (cols < n_valid)
    acc_ref[...] = acc_ref[...] + jnp.sum(jnp.where(keep, diff * diff, 0.0))

    @pl.when(i == pl.num_programs(0) - 1)
    def _finalize():
        out_ref[...] = acc_ref[...] * jnp.float32(1.0 / n_valid)


def distdist_loss(features, centroids1, centroids2, *, tau=TAU, tm=128):
    """Pallas implementation of DistDistLoss.forward. Returns a scalar f32."""
    n, d = features.shape
    k1, k2 = centroids1.shape[0], centroids2.shape[0]
    assert centroids1.shape[1] == d and centroids2.shape[1] == d

    # Row tile: multiple of 8 sublanes, no larger than the (8-padded) N.
    tm = max(8, _round_up(min(tm, _round_up(n, 8)), 8))
    np_ = _round_up(n, tm)              # padded N (rows masked in-kernel)
    kp1 = _round_up(k1, 128)            # lane-dense centroid counts
    kp2 = _round_up(k2, 128)

    f32 = jnp.float32
    f = jnp.zeros((np_, d), f32).at[:n, :].set(features.astype(f32))
    c1t = jnp.zeros((d, kp1), f32).at[:, :k1].set(centroids1.astype(f32).T)
    c2t = jnp.zeros((d, kp2), f32).at[:, :k2].set(centroids2.astype(f32).T)

    kernel = functools.partial(_distdist_kernel, n_valid=n, k1=k1, k2=k2,
                               tm=tm, tau=tau)

    out = pl.pallas_call(
        kernel,
        out_shape=jax.ShapeDtypeStruct((1, 1), f32),
        grid_spec=pltpu.PrefetchScalarGridSpec(
            num_scalar_prefetch=0,
            grid=(np_ // tm,),
            in_specs=[
                pl.BlockSpec((np_, d), lambda i: (0, 0)),    # features (resident)
                pl.BlockSpec((d, kp1), lambda i: (0, 0)),    # centroids1.T (padded)
                pl.BlockSpec((d, kp2), lambda i: (0, 0)),    # centroids2.T (padded)
            ],
            out_specs=pl.BlockSpec((1, 1), lambda i: (0, 0)),
            scratch_shapes=[
                pltpu.VMEM((np_, kp1), f32),   # n1: normalized probs, resident
                pltpu.VMEM((np_, kp2), f32),   # n2
                pltpu.VMEM((1, 1), f32),       # scalar loss accumulator
            ],
        ),
        compiler_params=pltpu.CompilerParams(
            # Row-tile axis is the reduction axis of the scalar accumulator,
            # so it must stay sequential ("arbitrary").
            dimension_semantics=("arbitrary",),
        ),
    )(f, c1t, c2t)
    return out[0, 0]


def _reference(features, centroids1, centroids2, tau=TAU):
    """Pure-JAX reference mirroring the PyTorch code (for sanity check)."""
    def probs(c):
        return jax.nn.softmax((features @ c.T) / tau, axis=-1)

    def self_cos(p):
        nrm = jnp.maximum(jnp.linalg.norm(p, axis=-1, keepdims=True), 1e-12)
        x = p / nrm
        return x @ x.T

    d1 = 1.0 - self_cos(probs(centroids1))
    d2 = 1.0 - self_cos(probs(centroids2))
    dist = jnp.sqrt(jnp.sum((d1 - d2 + PDIST_EPS) ** 2, axis=-1))
    return jnp.mean(dist ** 2)


if __name__ == "__main__":
    key = jax.random.PRNGKey(0)
    kf, kc1, kc2 = jax.random.split(key, 3)

    # Deliberately unaligned sizes to exercise the padding/masking paths.
    N, D, K1, K2 = 50, 32, 10, 20
    features = jax.random.normal(kf, (N, D), dtype=jnp.float32)
    centroids1 = jax.random.normal(kc1, (K1, D), dtype=jnp.float32)
    centroids2 = jax.random.normal(kc2, (K2, D), dtype=jnp.float32)

    # tm=32 -> padded N=64, grid=(2,): exercises multi-tile accumulation.
    loss = jax.block_until_ready(
        distdist_loss(features, centroids1, centroids2, tm=32))
    ref = jax.block_until_ready(_reference(features, centroids1, centroids2))

    assert jnp.allclose(loss, ref, rtol=5e-4, atol=1e-5), (loss, ref)
    print("KERNEL_OK")
</pallas_src>

<mosaic_0001>
module attributes {stable_mosaic.version = 11 : i64} {
  func.func @_distdist_kernel(%arg0: i32, %arg1: memref<64x32xf32, #tpu.memory_space<vmem>>, %arg2: memref<32x128xf32, #tpu.memory_space<vmem>>, %arg3: memref<32x128xf32, #tpu.memory_space<vmem>>, %arg4: memref<1x1xf32, #tpu.memory_space<vmem>>, %arg5: memref<64x128xf32, #tpu.memory_space<vmem>>, %arg6: memref<64x128xf32, #tpu.memory_space<vmem>>, %arg7: memref<1x1xf32, #tpu.memory_space<vmem>>) attributes {dimension_semantics = [#tpu.dimension_semantics<arbitrary>], iteration_bounds = array<i64: 2>, scalar_prefetch = 0 : i64, scratch_operands = 3 : i64, tpu.core_type = #tpu.core_type<tc>, window_params = [{pipeline_mode = #tpu.pipeline_mode<synchronous>, transform_indices = @transform_0, window_bounds = array<i64: 64, 32>}, {pipeline_mode = #tpu.pipeline_mode<synchronous>, transform_indices = @transform_1, window_bounds = array<i64: 32, 128>}, {pipeline_mode = #tpu.pipeline_mode<synchronous>, transform_indices = @transform_2, window_bounds = array<i64: 32, 128>}, {pipeline_mode = #tpu.pipeline_mode<synchronous>, transform_indices = @transform_3, window_bounds = array<i64: 1, 1>}]} {
    %c0_i32 = arith.constant 0 : i32
    %0 = arith.cmpi eq, %arg0, %c0_i32 : i32
    %1 = arith.extui %0 : i1 to i32
    %c0_i32_0 = arith.constant 0 : i32
    %2 = arith.cmpi ne, %1, %c0_i32_0 : i32
    scf.if %2 {
      %c0_16 = arith.constant 0 : index
      %c0_17 = arith.constant 0 : index
      %39 = vector.load %arg1[%c0_16, %c0_17] : memref<64x32xf32, #tpu.memory_space<vmem>>, vector<64x32xf32>
      %cst_18 = arith.constant 5.000000e+00 : f32
      %40 = vector.broadcast %cst_18 : f32 to vector<64x32xf32>
      %41 = arith.mulf %39, %40 : vector<64x32xf32>
      %c0_19 = arith.constant 0 : index
      %c0_20 = arith.constant 0 : index
      %42 = vector.load %arg2[%c0_19, %c0_20] : memref<32x128xf32, #tpu.memory_space<vmem>>, vector<32x128xf32>
      %cst_21 = arith.constant dense<0.000000e+00> : vector<64x128xf32>
      %43 = tpu.matmul %41, %42, %cst_21 {dimension_numbers = #tpu.dot_dimension_numbers<[1], [0], [0], [1], [0, 0, 1, 1], [], []>} : vector<64x32xf32>, vector<32x128xf32>, vector<64x128xf32> -> vector<64x128xf32>
      %44 = tpu.iota {dimensions = array<i32: 1>} : vector<64x128xi32>
      %c10_i32 = arith.constant 10 : i32
      %45 = vector.broadcast %c10_i32 : i32 to vector<64x128xi32>
      %46 = arith.cmpi slt, %44, %45 : vector<64x128xi32>
      %cst_22 = arith.constant -1.000000e+30 : f32
      %47 = vector.broadcast %cst_22 : f32 to vector<64x128xf32>
      %48 = arith.select %46, %43, %47 : vector<64x128xi1>, vector<64x128xf32>
      %cst_23 = arith.constant dense<0xFF800000> : vector<64xf32>
      %49 = vector.multi_reduction <maximumf>, %48, %cst_23 [1] : vector<64x128xf32> to vector<64xf32>
      %50 = vector.shape_cast %49 : vector<64xf32> to vector<64x1xf32>
      %51 = vector.broadcast %50 : vector<64x1xf32> to vector<64x128xf32>
      %52 = arith.subf %48, %51 : vector<64x128xf32>
      %53 = math.exp %52 : vector<64x128xf32>
      %cst_24 = arith.constant 0.000000e+00 : f32
      %54 = vector.broadcast %cst_24 : f32 to vector<64x128xf32>
      %55 = arith.select %46, %53, %54 : vector<64x128xi1>, vector<64x128xf32>
      %56 = arith.mulf %55, %55 : vector<64x128xf32>
      %cst_25 = arith.constant dense<0.000000e+00> : vector<64xf32>
      %57 = vector.multi_reduction <add>, %56, %cst_25 [1] : vector<64x128xf32> to vector<64xf32>
      %58 = vector.shape_cast %57 : vector<64xf32> to vector<64x1xf32>
      %59 = math.rsqrt %58 : vector<64x1xf32>
      %60 = vector.broadcast %59 : vector<64x1xf32> to vector<64x128xf32>
      %61 = arith.mulf %55, %60 : vector<64x128xf32>
      %c0_26 = arith.constant 0 : index
      %c0_27 = arith.constant 0 : index
      %62 = vector.load %arg5[%c0_26, %c0_27] : memref<64x128xf32, #tpu.memory_space<vmem>>, vector<64x128xf32>
      tpu.vector_store %arg5[%c0_26, %c0_27], %61 {strides = array<i32>} : memref<64x128xf32, #tpu.memory_space<vmem>>, vector<64x128xf32>,
      %c0_28 = arith.constant 0 : index
      %c0_29 = arith.constant 0 : index
      %63 = vector.load %arg3[%c0_28, %c0_29] : memref<32x128xf32, #tpu.memory_space<vmem>>, vector<32x128xf32>
      %cst_30 = arith.constant dense<0.000000e+00> : vector<64x128xf32>
      %64 = tpu.matmul %41, %63, %cst_30 {dimension_numbers = #tpu.dot_dimension_numbers<[1], [0], [0], [1], [0, 0, 1, 1], [], []>} : vector<64x32xf32>, vector<32x128xf32>, vector<64x128xf32> -> vector<64x128xf32>
      %65 = tpu.iota {dimensions = array<i32: 1>} : vector<64x128xi32>
      %c20_i32 = arith.constant 20 : i32
      %66 = vector.broadcast %c20_i32 : i32 to vector<64x128xi32>
      %67 = arith.cmpi slt, %65, %66 : vector<64x128xi32>
      %cst_31 = arith.constant -1.000000e+30 : f32
      %68 = vector.broadcast %cst_31 : f32 to vector<64x128xf32>
      %69 = arith.select %67, %64, %68 : vector<64x128xi1>, vector<64x128xf32>
      %cst_32 = arith.constant dense<0xFF800000> : vector<64xf32>
      %70 = vector.multi_reduction <maximumf>, %69, %cst_32 [1] : vector<64x128xf32> to vector<64xf32>
      %71 = vector.shape_cast %70 : vector<64xf32> to vector<64x1xf32>
      %72 = vector.broadcast %71 : vector<64x1xf32> to vector<64x128xf32>
      %73 = arith.subf %69, %72 : vector<64x128xf32>
      %74 = math.exp %73 : vector<64x128xf32>
      %cst_33 = arith.constant 0.000000e+00 : f32
      %75 = vector.broadcast %cst_33 : f32 to vector<64x128xf32>
      %76 = arith.select %67, %74, %75 : vector<64x128xi1>, vector<64x128xf32>
      %77 = arith.mulf %76, %76 : vector<64x128xf32>
      %cst_34 = arith.constant dense<0.000000e+00> : vector<64xf32>
      %78 = vector.multi_reduction <add>, %77, %cst_34 [1] : vector<64x128xf32> to vector<64xf32>
      %79 = vector.shape_cast %78 : vector<64xf32> to vector<64x1xf32>
      %80 = math.rsqrt %79 : vector<64x1xf32>
      %81 = vector.broadcast %80 : vector<64x1xf32> to vector<64x128xf32>
      %82 = arith.mulf %76, %81 : vector<64x128xf32>
      %c0_35 = arith.constant 0 : index
      %c0_36 = arith.constant 0 : index
      %83 = vector.load %arg6[%c0_35, %c0_36] : memref<64x128xf32, #tpu.memory_space<vmem>>, vector<64x128xf32>
      tpu.vector_store %arg6[%c0_35, %c0_36], %82 {strides = array<i32>} : memref<64x128xf32, #tpu.memory_space<vmem>>, vector<64x128xf32>,
      %cst_37 = arith.constant 0.000000e+00 : f32
      %84 = vector.broadcast %cst_37 : f32 to vector<1x1xf32>
      %c0_38 = arith.constant 0 : index
      %c0_39 = arith.constant 0 : index
      %85 = vector.load %arg7[%c0_38, %c0_39] : memref<1x1xf32, #tpu.memory_space<vmem>>, vector<1x1xf32>
      tpu.vector_store %arg7[%c0_38, %c0_39], %84 {strides = array<i32>} : memref<1x1xf32, #tpu.memory_space<vmem>>, vector<1x1xf32>,
    } else {
    }
    %c32_i32 = arith.constant 32 : i32
    %3 = arith.muli %arg0, %c32_i32 : i32
    %4 = tpu.assume_multiple %3, 32 : i32
    %5 = arith.index_cast %4 : i32 to index
    %c0 = arith.constant 0 : index
    %6 = vector.load %arg5[%5, %c0] : memref<64x128xf32, #tpu.memory_space<vmem>>, vector<32x128xf32>
    %7 = arith.index_cast %4 : i32 to index
    %c0_1 = arith.constant 0 : index
    %8 = vector.load %arg6[%7, %c0_1] : memref<64x128xf32, #tpu.memory_space<vmem>>, vector<32x128xf32>
    %c0_2 = arith.constant 0 : index
    %c0_3 = arith.constant 0 : index
    %9 = vector.load %arg5[%c0_2, %c0_3] : memref<64x128xf32, #tpu.memory_space<vmem>>, vector<64x128xf32>
    %cst = arith.constant dense<0.000000e+00> : vector<32x64xf32>
    %10 = tpu.matmul %6, %9, %cst {dimension_numbers = #tpu.dot_dimension_numbers<[1], [1], [0], [0], [0, 0, 1, 0], [], []>} : vector<32x128xf32>, vector<64x128xf32>, vector<32x64xf32> -> vector<32x64xf32>
    %c0_4 = arith.constant 0 : index
    %c0_5 = arith.constant 0 : index
    %11 = vector.load %arg6[%c0_4, %c0_5] : memref<64x128xf32, #tpu.memory_space<vmem>>, vector<64x128xf32>
    %cst_6 = arith.constant dense<0.000000e+00> : vector<32x64xf32>
    %12 = tpu.matmul %8, %11, %cst_6 {dimension_numbers = #tpu.dot_dimension_numbers<[1], [1], [0], [0], [0, 0, 1, 0], [], []>} : vector<32x128xf32>, vector<64x128xf32>, vector<32x64xf32> -> vector<32x64xf32>
    %13 = arith.subf %12, %10 : vector<32x64xf32>
    %cst_7 = arith.constant 9.99999997E-7 : f32
    %14 = vector.broadcast %cst_7 : f32 to vector<32x64xf32>
    %15 = arith.addf %13, %14 : vector<32x64xf32>
    %16 = tpu.iota {dimensions = array<i32: 0>} : vector<32x64xi32>
    %17 = vector.broadcast %4 : i32 to vector<32x64xi32>
    %18 = arith.addi %17, %16 : vector<32x64xi32>
    %19 = tpu.iota {dimensions = array<i32: 1>} : vector<32x64xi32>
    %c50_i32 = arith.constant 50 : i32
    %20 = vector.broadcast %c50_i32 : i32 to vector<32x64xi32>
    %21 = arith.cmpi slt, %18, %20 : vector<32x64xi32>
    %c50_i32_8 = arith.constant 50 : i32
    %22 = vector.broadcast %c50_i32_8 : i32 to vector<32x64xi32>
    %23 = arith.cmpi slt, %19, %22 : vector<32x64xi32>
    %24 = arith.andi %21, %23 : vector<32x64xi1>
    %c0_9 = arith.constant 0 : index
    %c0_10 = arith.constant 0 : index
    %25 = vector.load %arg7[%c0_9, %c0_10] : memref<1x1xf32, #tpu.memory_space<vmem>>, vector<1x1xf32>
    %26 = arith.mulf %15, %15 : vector<32x64xf32>
    %cst_11 = arith.constant 0.000000e+00 : f32
    %27 = vector.broadcast %cst_11 : f32 to vector<32x64xf32>
    %28 = arith.select %24, %26, %27 : vector<32x64xi1>, vector<32x64xf32>
    %29 = vector.shape_cast %28 : vector<32x64xf32> to vector<1x32x64xf32>
    %cst_12 = arith.constant dense<0.000000e+00> : vector<1xf32>
    %30 = vector.multi_reduction <add>, %29, %cst_12 [1, 2] : vector<1x32x64xf32> to vector<1xf32>
    %31 = vector.shape_cast %30 : vector<1xf32> to vector<1x1x1xf32>
    %32 = vector.extract %31[0, 0, 0] : f32 from vector<1x1x1xf32>
    %33 = vector.broadcast %32 : f32 to vector<1x1xf32>
    %34 = arith.addf %25, %33 : vector<1x1xf32>
    %c0_13 = arith.constant 0 : index
    %c0_14 = arith.constant 0 : index
    %35 = vector.load %arg7[%c0_13, %c0_14] : memref<1x1xf32, #tpu.memory_space<vmem>>, vector<1x1xf32>
    tpu.vector_store %arg7[%c0_13, %c0_14], %34 {strides = array<i32>} : memref<1x1xf32, #tpu.memory_space<vmem>>, vector<1x1xf32>,
    %c1_i32 = arith.constant 1 : i32
    %36 = arith.cmpi eq, %arg0, %c1_i32 : i32
    %37 = arith.extui %36 : i1 to i32
    %c0_i32_15 = arith.constant 0 : i32
    %38 = arith.cmpi ne, %37, %c0_i32_15 : i32
    scf.if %38 {
      %c0_16 = arith.constant 0 : index
      %c0_17 = arith.constant 0 : index
      %39 = vector.load %arg7[%c0_16, %c0_17] : memref<1x1xf32, #tpu.memory_space<vmem>>, vector<1x1xf32>
      %cst_18 = arith.constant 2.000000e-02 : f32
      %40 = vector.broadcast %cst_18 : f32 to vector<1x1xf32>
      %41 = arith.mulf %39, %40 : vector<1x1xf32>
      %c0_19 = arith.constant 0 : index
      %c0_20 = arith.constant 0 : index
      %42 = vector.load %arg4[%c0_19, %c0_20] : memref<1x1xf32, #tpu.memory_space<vmem>>, vector<1x1xf32>
      tpu.vector_store %arg4[%c0_19, %c0_20], %41 {strides = array<i32>} : memref<1x1xf32, #tpu.memory_space<vmem>>, vector<1x1xf32>,
    } else {
    }
    return
  }
  func.func @transform_0(%arg0: i32) -> (i32, i32) {
    %c0_i32 = arith.constant 0 : i32
    %c0_i32_0 = arith.constant 0 : i32
    %c0_i32_1 = arith.constant 0 : i32
    return %c0_i32, %c0_i32_0 : i32, i32
  }
  func.func @transform_1(%arg0: i32) -> (i32, i32) {
    %c0_i32 = arith.constant 0 : i32
    %c0_i32_0 = arith.constant 0 : i32
    %c0_i32_1 = arith.constant 0 : i32
    return %c0_i32, %c0_i32_0 : i32, i32
  }
  func.func @transform_2(%arg0: i32) -> (i32, i32) {
    %c0_i32 = arith.constant 0 : i32
    %c0_i32_0 = arith.constant 0 : i32
    %c0_i32_1 = arith.constant 0 : i32
    return %c0_i32, %c0_i32_0 : i32, i32
  }
  func.func @transform_3(%arg0: i32) -> (i32, i32) {
    %c0_i32 = arith.constant 0 : i32
    %c0_i32_0 = arith.constant 0 : i32
    %c0_i32_1 = arith.constant 0 : i32
    return %c0_i32, %c0_i32_0 : i32, i32
  }
}

</mosaic_0001>

<llo_original>
// kernel: tpu_custom_call.1
$region0: #{tpu_custom_call.1}
  #allocation0 [shape = 'u32[]', space=smem, size = 0x4, offset = 0x4, fixed_abs, tag = 'smem constant byte address 0x4 - core index']
  #allocation1 [shape = 'u32[72,128]{1,0:T(1,128)}', space=vmem, size = 0x9000, scoped, tag = 'internal scratch']
  #allocation2 [shape = 'f32[64,128]{1,0:T(8,128)}', space=vmem, size = 0x8000, scoped, tag = 'scratch operand']
  #allocation3 [shape = 'f32[64,128]{1,0:T(8,128)}', space=vmem, size = 0x8000, scoped, tag = 'scratch operand']
  #allocation4 [shape = 'f32[1,1]{1,0:T(1,128)}', space=vmem, size = 0x200, scoped, tag = 'scratch operand']
  %s0 = inlined_call_operand.vmem [shape: f32[64,32], index: 0, kind: input, shape index: {}]
  %s1 = inlined_call_operand.vmem [shape: f32[32,128], index: 1, kind: input, shape index: {}]
  %s2 = inlined_call_operand.vmem [shape: f32[32,128], index: 2, kind: input, shape index: {}]
  %s3 = inlined_call_operand.hbm [shape: f32[1,1], index: 3, kind: output, shape index: {}]
  %s4 = sld [smem:[#allocation0]]
  $region53: #{tpu_custom_call.1} parent=0
    _
  %s6 = ssub.s32 1, %s4
  %s7 = scalar_select 0, %s6, %s4
  $region1: #{tpu_custom_call.1} parent=0
    #allocation5 [shape = 'u8[512]{0}', space=vmem, size = 0x400, scoped, tag = 'output window, operand 0, single buffered']
    #allocation6 [shape = 's32[2]{0}', space=sflag, size = 0x8, scoped, tag = 'scoped memory for tpu_custom_call.1']
    %8 = vsyncpa [#allocation6], 0
    loop: start=0, step=1, limit=4
    $region2: #{tpu_custom_call.1} parent=1 // loop_pre_header
      _
    $region3: #{tpu_custom_call.1} parent=1 // loop_header
      %s10 = sphi 0, %s14
      %p11 = scmp.ge.s32.totalorder %s10, 4
      %s18 = sphi 0, %s18
      %s20 = sphi 0, %s18
      %s21 = sphi 0, %s20
      %s35 = sphi 0, %s21
      %s39 = sphi 0, %s39
      %s41 = sphi 0, %s39
      %s42 = sphi 0, %s41
      %s56 = sphi 0, %s42
      %s60 = sphi 0, %s60
      %s62 = sphi 0, %s60
      %s63 = sphi 0, %s62
      %s77 = sphi 0, %s63
      %s81 = sphi 0, %s81
      %s83 = sphi 0, %s81
      %s84 = sphi 0, %s83
      %s98 = sphi 0, %s84
    $region4: #{tpu_custom_call.1} parent=1 // loop_header_branch
      %13 = sbr.rel (%p11) target = $region8
    $region5: #{tpu_custom_call.1} parent=1 // loop_body
      %s15 = ssub.s32 %s10, 1
      %s16 = ssub.s32 %s10, 2
      %s17 = sadd.s32 %s10, 1
      %s19 = sadd.s32 %s18, 1
      %p22 = scmp.eq.s32.totalorder %s10, 1
      %p23 = scmp.ne.s32.totalorder %s18, %s20
      %p24 = scmp.eq.s32.totalorder %s10, 0
      %p25 = por %p23, %p24
      %p26 = scmp.ne.s32.totalorder %s18, %s20
      %p27 = scmp.eq.s32.totalorder %s15, 1
      %p28 = por %p26, %p27
      %p29 = scmp.ne.s32.totalorder %s20, %s21
      %p30 = scmp.eq.s32.totalorder %s15, 0
      %p31 = por %p29, %p30
      %p32 = scmp.ne.s32.totalorder %s20, %s21
      %p33 = scmp.eq.s32.totalorder %s16, 1
      %p34 = por %p32, %p33
      %p36 = scmp.ne.s32.totalorder %s21, %s35
      %p37 = scmp.eq.s32.totalorder %s16, 0
      %p38 = por %p36, %p37
      %s40 = sadd.s32 %s39, 1
      %p43 = scmp.eq.s32.totalorder %s10, 1
      %p44 = scmp.ne.s32.totalorder %s39, %s41
      %p45 = scmp.eq.s32.totalorder %s10, 0
      %p46 = por %p44, %p45
      %p47 = scmp.ne.s32.totalorder %s39, %s41
      %p48 = scmp.eq.s32.totalorder %s15, 1
      %p49 = por %p47, %p48
      %p50 = scmp.ne.s32.totalorder %s41, %s42
      %p51 = scmp.eq.s32.totalorder %s15, 0
      %p52 = por %p50, %p51
      %p53 = scmp.ne.s32.totalorder %s41, %s42
      %p54 = scmp.eq.s32.totalorder %s16, 1
      %p55 = por %p53, %p54
      %p57 = scmp.ne.s32.totalorder %s42, %s56
      %p58 = scmp.eq.s32.totalorder %s16, 0
      %p59 = por %p57, %p58
      %s61 = sadd.s32 %s60, 1
      %p64 = scmp.eq.s32.totalorder %s10, 1
      %p65 = scmp.ne.s32.totalorder %s60, %s62
      %p66 = scmp.eq.s32.totalorder %s10, 0
      %p67 = por %p65, %p66
      %p68 = scmp.ne.s32.totalorder %s60, %s62
      %p69 = scmp.eq.s32.totalorder %s15, 1
      %p70 = por %p68, %p69
      %p71 = scmp.ne.s32.totalorder %s62, %s63
      %p72 = scmp.eq.s32.totalorder %s15, 0
      %p73 = por %p71, %p72
      %p74 = scmp.ne.s32.totalorder %s62, %s63
      %p75 = scmp.eq.s32.totalorder %s16, 1
      %p76 = por %p74, %p75
      %p78 = scmp.ne.s32.totalorder %s63, %s77
      %p79 = scmp.eq.s32.totalorder %s16, 0
      %p80 = por %p78, %p79
      %s82 = sadd.s32 %s81, 1
      %p85 = scmp.eq.s32.totalorder %s10, 1
      %p86 = scmp.ne.s32.totalorder %s81, %s83
      %p87 = scmp.eq.s32.totalorder %s10, 0
      %p88 = por %p86, %p87
      %p89 = scmp.ne.s32.totalorder %s81, %s83
      %p90 = scmp.eq.s32.totalorder %s15, 1
      %p91 = por %p89, %p90
      %p92 = scmp.ne.s32.totalorder %s83, %s84
      %p93 = scmp.eq.s32.totalorder %s15, 0
      %p94 = por %p92, %p93
      %p95 = scmp.ne.s32.totalorder %s83, %s84
      %p96 = scmp.eq.s32.totalorder %s16, 1
      %p97 = por %p95, %p96
      %p99 = scmp.ne.s32.totalorder %s84, %s98
      %p100 = scmp.eq.s32.totalorder %s16, 0
      %p101 = por %p99, %p100
      %p102 = scmp.le.s32.totalorder 1, %s10
      %p103 = scmp.lt.s32.totalorder %s10, 3
      %p104 = pnand %p102, %p103
      %p105 = pneg %p104
      // Predicated region
      $region9: #{tpu_custom_call.1} parent=5 // pred_check
        _
      $region10: #{tpu_custom_call.1} parent=5 // pred_check_branch
        %107 = sbr.rel (%p104) target = $region12
      $region11: #{tpu_custom_call.1} parent=5 // pred_region
        %s108 = ssub.s32 %s10, 1
        // Predicated region
        $region13: #{tpu_custom_call.1} parent=11 // pred_check
          %p109 = pneg %p31
        $region14: #{tpu_custom_call.1} parent=11 // pred_check_branch
          %111 = sbr.rel (%p109) target = $region16
        $region15: #{tpu_custom_call.1} parent=11 // pred_region
          _
        $region16: #{tpu_custom_call.1} parent=11 // pred_fallthru
          _
        // Predicated region
        $region17: #{tpu_custom_call.1} parent=11 // pred_check
          %p112 = pneg %p52
        $region18: #{tpu_custom_call.1} parent=11 // pred_check_branch
          %114 = sbr.rel (%p112) target = $region20
        $region19: #{tpu_custom_call.1} parent=11 // pred_region
          _
        $region20: #{tpu_custom_call.1} parent=11 // pred_fallthru
          _
        // Predicated region
        $region21: #{tpu_custom_call.1} parent=11 // pred_check
          %p115 = pneg %p73
        $region22: #{tpu_custom_call.1} parent=11 // pred_check_branch
          %117 = sbr.rel (%p115) target = $region24
        $region23: #{tpu_custom_call.1} parent=11 // pred_region
          _
        $region24: #{tpu_custom_call.1} parent=11 // pred_fallthru
          _
      $region12: #{tpu_custom_call.1} parent=5 // pred_fallthru
        _
      %p118 = scmp.lt.s32.totalorder %s10, 2
      // Predicated region
      $region25: #{tpu_custom_call.1} parent=5 // pred_check
        %p119 = pneg %p118
      $region26: #{tpu_custom_call.1} parent=5 // pred_check_branch
        %121 = sbr.rel (%p119) target = $region28
      $region27: #{tpu_custom_call.1} parent=5 // pred_region
        _
      $region28: #{tpu_custom_call.1} parent=5 // pred_fallthru
        _
      %p122 = scmp.le.s32.totalorder 1, %s10
      %p123 = scmp.lt.s32.totalorder %s10, 3
      %p124 = pnand %p122, %p123
      %p125 = pneg %p124
      // Predicated region
      $region29: #{tpu_custom_call.1} parent=5 // pred_check
        _
      $region30: #{tpu_custom_call.1} parent=5 // pred_check_branch
        %127 = sbr.rel (%p124) target = $region32
      $region31: #{tpu_custom_call.1} parent=5 // pred_region
        %s128 = ssub.s32 %s10, 1
        %p129 = pneg %p31
        %p130 = pneg %p28
        %p131 = pneg %p52
        %p132 = pneg %p49
        %p133 = pneg %p73
        %p134 = pneg %p70
        %p135 = pneg %p94
        %p136 = pneg %p91
        %p137 = scmp.eq.s32.totalorder %s15, 0
        // Predicated region
        $region33: #{tpu_custom_call.1} parent=31 // pred_check
          %p138 = pneg %p137
        $region34: #{tpu_custom_call.1} parent=31 // pred_check_branch
          %140 = sbr.rel (%p138) target = $region36
        $region35: #{tpu_custom_call.1} parent=31 // pred_region
          %v141 = vld [vmem:[%s0] sm:$0xff]
          %v142 = vld [vmem:[%s0 + $0x8] sm:$0xff]
          %v143 = vld [vmem:[%s0 + $0x10] sm:$0xff]
          %v144 = vld [vmem:[%s0 + $0x18] sm:$0xff]
          %v145 = vld [vmem:[%s0 + $0x20] sm:$0xff]
          %v146 = vld [vmem:[%s0 + $0x28] sm:$0xff]
          %v147 = vld [vmem:[%s0 + $0x30] sm:$0xff]
          %v148 = vld [vmem:[%s0 + $0x38] sm:$0xff]
          %v149 = vmul.f32 %v141, 5.0
          %v150 = vmul.f32 %v142, 5.0
          %v151 = vmul.f32 %v143, 5.0
          %v152 = vmul.f32 %v144, 5.0
          %v153 = vmul.f32 %v145, 5.0
          %v154 = vmul.f32 %v146, 5.0
          %v155 = vmul.f32 %v147, 5.0
          %v156 = vmul.f32 %v148, 5.0
          %v157 = vld [vmem:[%s1] sm:$0xff]
          %v158 = vld [vmem:[%s1 + $0x8] sm:$0xff]
          %v159 = vld [vmem:[%s1 + $0x10] sm:$0xff]
          %v160 = vld [vmem:[%s1 + $0x18] sm:$0xff]
          %vm161 = vcmask 261120
          %v163 = vsel %vm161, %v149, 0
          %v166 = vsel %vm161, %v150, 0
          %v169 = vsel %vm161, %v151, 0
          %v172 = vsel %vm161, %v152, 0
          %v175 = vsel %vm161, %v153, 0
          %v178 = vsel %vm161, %v154, 0
          %v181 = vsel %vm161, %v155, 0
          %v184 = vsel %vm161, %v156, 0
          %186 = vmatpush.msra.mxu0 0.0
          %187 = vmatpush.msra.mxu0 0.0
          %188 = vmatpush.msra.mxu0 0.0
          %189 = vmatpush.msra.mxu0 0.0
          %190 = vmatpush.msra.mxu0 0.0
          %191 = vmatpush.msra.mxu0 0.0
          %192 = vmatpush.msra.mxu0 0.0
          %193 = vmatpush.msra.mxu0 0.0
          %194 = vmatpush.msra.mxu0 0.0
          %195 = vmatpush.msra.mxu0 0.0
          %196 = vmatpush.msra.mxu0 0.0
          %197 = vmatpush.msra.mxu0 0.0
          %198 = vmatpush.msra.mxu0 %v160
          %199 = vmatpush.msra.mxu0 %v159
          %200 = vmatpush.msra.mxu0 %v158
          %201 = vmatpush.msra.mxu0 %v157
          %202 = vmatmul.f32.gmra.mxu0 %v163
          %v203 = vpop.f32.mrf.mxu0
          %v204 = vadd.f32 0.0, %v203
          %205 = vmatmul.f32.gmra.mxu0 %v166
          %v206 = vpop.f32.mrf.mxu0
          %v207 = vadd.f32 0.0, %v206
          %208 = vmatmul.f32.gmra.mxu0 %v169
          %v209 = vpop.f32.mrf.mxu0
          %v210 = vadd.f32 0.0, %v209
          %211 = vmatmul.f32.gmra.mxu0 %v172
          %v212 = vpop.f32.mrf.mxu0
          %v213 = vadd.f32 0.0, %v212
          %214 = vmatmul.f32.gmra.mxu0 %v175
          %v215 = vpop.f32.mrf.mxu0
          %v216 = vadd.f32 0.0, %v215
          %217 = vmatmul.f32.gmra.mxu0 %v178
          %v218 = vpop.f32.mrf.mxu0
          %v219 = vadd.f32 0.0, %v218
          %220 = vmatmul.f32.gmra.mxu0 %v181
          %v221 = vpop.f32.mrf.mxu0
          %v222 = vadd.f32 0.0, %v221
          %223 = vmatmul.f32.gmra.mxu0 %v184
          %v224 = vpop.f32.mrf.mxu0
          %v225 = vadd.f32 0.0, %v224
          %226 = vdwg.mxu0
          %v227 = vlaneseq
          %v228 = vand.u32 %v227, 127
          %vm229 = vcmp.lt.s32.totalorder %v228, 10
          %v230 = vsel %vm229, %v204, -1e+30
          %v231 = vsel %vm229, %v207, -1e+30
          %v232 = vsel %vm229, %v210, -1e+30
          %v233 = vsel %vm229, %v213, -1e+30
          %v234 = vsel %vm229, %v216, -1e+30
          %v235 = vsel %vm229, %v219, -1e+30
          %v236 = vsel %vm229, %v222, -1e+30
          %v237 = vsel %vm229, %v225, -1e+30
          %238 = vmax.xlane.f32.xlu0 %v230
          %v239 = vpop.xlane.xlu0 %238
          %240 = vmax.xlane.f32.xlu0 %v231
          %v241 = vpop.xlane.xlu0 %240
          %242 = vmax.xlane.f32.xlu0 %v232
          %v243 = vpop.xlane.xlu0 %242
          %244 = vmax.xlane.f32.xlu0 %v233
          %v245 = vpop.xlane.xlu0 %244
          %246 = vmax.xlane.f32.xlu0 %v234
          %v247 = vpop.xlane.xlu0 %246
          %248 = vmax.xlane.f32.xlu0 %v235
          %v249 = vpop.xlane.xlu0 %248
          %250 = vmax.xlane.f32.xlu0 %v236
          %v251 = vpop.xlane.xlu0 %250
          %252 = vmax.xlane.f32.xlu0 %v237
          %v253 = vpop.xlane.xlu0 %252
          %v254 = vsub.f32 %v230, %v239
          %v255 = vsub.f32 %v231, %v241
          %v256 = vsub.f32 %v232, %v243
          %v257 = vsub.f32 %v233, %v245
          %v258 = vsub.f32 %v234, %v247
          %v259 = vsub.f32 %v235, %v249
          %v260 = vsub.f32 %v236, %v251
          %v261 = vsub.f32 %v237, %v253
          %v262 = vmul.f32 %v254, 1.442695
          %v263 = vpow.pop %v262
          %v264 = vmul.f32 %v255, 1.442695
          %v265 = vpow.pop %v264
          %v266 = vmul.f32 %v256, 1.442695
          %v267 = vpow.pop %v266
          %v268 = vmul.f32 %v257, 1.442695
          %v269 = vpow.pop %v268
          %v270 = vmul.f32 %v258, 1.442695
          %v271 = vpow.pop %v270
          %v272 = vmul.f32 %v259, 1.442695
          %v273 = vpow.pop %v272
          %v274 = vmul.f32 %v260, 1.442695
          %v275 = vpow.pop %v274
          %v276 = vmul.f32 %v261, 1.442695
          %v277 = vpow.pop %v276
          %v278 = vsel %vm229, %v263, 0.0
          %v279 = vsel %vm229, %v265, 0.0
          %v280 = vsel %vm229, %v267, 0.0
          %v281 = vsel %vm229, %v269, 0.0
          %v282 = vsel %vm229, %v271, 0.0
          %v283 = vsel %vm229, %v273, 0.0
          %v284 = vsel %vm229, %v275, 0.0
          %v285 = vsel %vm229, %v277, 0.0
          %v286 = vmul.f32 %v278, %v278
          %v287 = vmul.f32 %v279, %v279
          %v288 = vmul.f32 %v280, %v280
          %v289 = vmul.f32 %v281, %v281
          %v290 = vmul.f32 %v282, %v282
          %v291 = vmul.f32 %v283, %v283
          %v292 = vmul.f32 %v284, %v284
          %v293 = vmul.f32 %v285, %v285
          %294 = vadd.xlane.f32.xlu0 %v286
          %v295 = vpop.xlane.xlu0 %294
          %296 = vadd.xlane.f32.xlu0 %v287
          %v297 = vpop.xlane.xlu0 %296
          %298 = vadd.xlane.f32.xlu0 %v288
          %v299 = vpop.xlane.xlu0 %298
          %300 = vadd.xlane.f32.xlu0 %v289
          %v301 = vpop.xlane.xlu0 %300
          %302 = vadd.xlane.f32.xlu0 %v290
          %v303 = vpop.xlane.xlu0 %302
          %304 = vadd.xlane.f32.xlu0 %v291
          %v305 = vpop.xlane.xlu0 %304
          %306 = vadd.xlane.f32.xlu0 %v292
          %v307 = vpop.xlane.xlu0 %306
          %308 = vadd.xlane.f32.xlu0 %v293
          %v309 = vpop.xlane.xlu0 %308
          %v310 = vrsqrt.pop %v295
          %v311 = vmul.f32 %v310, %v295
          %v312 = vmul.f32 %v311, %v310
          %v313 = vmul.f32 0.5, %v312
          %v314 = vsub.f32 1.5, %v313
          %v315 = vmul.f32 %v310, %v314
          %vm316 = vweird.f32 %v295
          %vm317 = vweird.f32 %v310
          %vm318 = vmor %vm316, %vm317
          %v319 = vsel %vm318, %v310, %v315
          %v320 = vrsqrt.pop %v297
          %v321 = vmul.f32 %v320, %v297
          %v322 = vmul.f32 %v321, %v320
          %v323 = vmul.f32 0.5, %v322
          %v324 = vsub.f32 1.5, %v323
          %v325 = vmul.f32 %v320, %v324
          %vm326 = vweird.f32 %v297
          %vm327 = vweird.f32 %v320
          %vm328 = vmor %vm326, %vm327
          %v329 = vsel %vm328, %v320, %v325
          %v330 = vrsqrt.pop %v299
          %v331 = vmul.f32 %v330, %v299
          %v332 = vmul.f32 %v331, %v330
          %v333 = vmul.f32 0.5, %v332
          %v334 = vsub.f32 1.5, %v333
          %v335 = vmul.f32 %v330, %v334
          %vm336 = vweird.f32 %v299
          %vm337 = vweird.f32 %v330
          %vm338 = vmor %vm336, %vm337
          %v339 = vsel %vm338, %v330, %v335
          %v340 = vrsqrt.pop %v301
          %v341 = vmul.f32 %v340, %v301
          %v342 = vmul.f32 %v341, %v340
          %v343 = vmul.f32 0.5, %v342
          %v344 = vsub.f32 1.5, %v343
          %v345 = vmul.f32 %v340, %v344
          %vm346 = vweird.f32 %v301
          %vm347 = vweird.f32 %v340
          %vm348 = vmor %vm346, %vm347
          %v349 = vsel %vm348, %v340, %v345
          %v350 = vrsqrt.pop %v303
          %v351 = vmul.f32 %v350, %v303
          %v352 = vmul.f32 %v351, %v350
          %v353 = vmul.f32 0.5, %v352
          %v354 = vsub.f32 1.5, %v353
          %v355 = vmul.f32 %v350, %v354
          %vm356 = vweird.f32 %v303
          %vm357 = vweird.f32 %v350
          %vm358 = vmor %vm356, %vm357
          %v359 = vsel %vm358, %v350, %v355
          %v360 = vrsqrt.pop %v305
          %v361 = vmul.f32 %v360, %v305
          %v362 = vmul.f32 %v361, %v360
          %v363 = vmul.f32 0.5, %v362
          %v364 = vsub.f32 1.5, %v363
          %v365 = vmul.f32 %v360, %v364
          %vm366 = vweird.f32 %v305
          %vm367 = vweird.f32 %v360
          %vm368 = vmor %vm366, %vm367
          %v369 = vsel %vm368, %v360, %v365
          %v370 = vrsqrt.pop %v307
          %v371 = vmul.f32 %v370, %v307
          %v372 = vmul.f32 %v371, %v370
          %v373 = vmul.f32 0.5, %v372
          %v374 = vsub.f32 1.5, %v373
          %v375 = vmul.f32 %v370, %v374
          %vm376 = vweird.f32 %v307
          %vm377 = vweird.f32 %v370
          %vm378 = vmor %vm376, %vm377
          %v379 = vsel %vm378, %v370, %v375
          %v380 = vrsqrt.pop %v309
          %v381 = vmul.f32 %v380, %v309
          %v382 = vmul.f32 %v381, %v380
          %v383 = vmul.f32 0.5, %v382
          %v384 = vsub.f32 1.5, %v383
          %v385 = vmul.f32 %v380, %v384
          %vm386 = vweird.f32 %v309
          %vm387 = vweird.f32 %v380
          %vm388 = vmor %vm386, %vm387
          %v389 = vsel %vm388, %v380, %v385
          %v390 = vmul.f32 %v278, %v319
          %v391 = vmul.f32 %v279, %v329
          %v392 = vmul.f32 %v280, %v339
          %v393 = vmul.f32 %v281, %v349
          %v394 = vmul.f32 %v282, %v359
          %v395 = vmul.f32 %v283, %v369
          %v396 = vmul.f32 %v284, %v379
          %v397 = vmul.f32 %v285, %v389
          %398 = vst [vmem:[#allocation2] sm:$0xff] %v390
          %399 = vst [vmem:[#allocation2 + $0x8] sm:$0xff] %v391
          %400 = vst [vmem:[#allocation2 + $0x10] sm:$0xff] %v392
          %401 = vst [vmem:[#allocation2 + $0x18] sm:$0xff] %v393
          %402 = vst [vmem:[#allocation2 + $0x20] sm:$0xff] %v394
          %403 = vst [vmem:[#allocation2 + $0x28] sm:$0xff] %v395
          %404 = vst [vmem:[#allocation2 + $0x30] sm:$0xff] %v396
          %405 = vst [vmem:[#allocation2 + $0x38] sm:$0xff] %v397
          %v406 = vld [vmem:[%s2] sm:$0xff]
          %v407 = vld [vmem:[%s2 + $0x8] sm:$0xff]
          %v408 = vld [vmem:[%s2 + $0x10] sm:$0xff]
          %v409 = vld [vmem:[%s2 + $0x18] sm:$0xff]
          %410 = vmatpush.msra.mxu0 0.0
          %411 = vmatpush.msra.mxu0 0.0
          %412 = vmatpush.msra.mxu0 0.0
          %413 = vmatpush.msra.mxu0 0.0
          %414 = vmatpush.msra.mxu0 0.0
          %415 = vmatpush.msra.mxu0 0.0
          %416 = vmatpush.msra.mxu0 0.0
          %417 = vmatpush.msra.mxu0 0.0
          %418 = vmatpush.msra.mxu0 0.0
          %419 = vmatpush.msra.mxu0 0.0
          %420 = vmatpush.msra.mxu0 0.0
          %421 = vmatpush.msra.mxu0 0.0
          %422 = vmatpush.msra.mxu0 %v409
          %423 = vmatpush.msra.mxu0 %v408
          %424 = vmatpush.msra.mxu0 %v407
          %425 = vmatpush.msra.mxu0 %v406
          %426 = vmatmul.f32.gmra.mxu0 %v163
          %v427 = vpop.f32.mrf.mxu0
          %v428 = vadd.f32 0.0, %v427
          %429 = vmatmul.f32.gmra.mxu0 %v166
          %v430 = vpop.f32.mrf.mxu0
          %v431 = vadd.f32 0.0, %v430
          %432 = vmatmul.f32.gmra.mxu0 %v169
          %v433 = vpop.f32.mrf.mxu0
          %v434 = vadd.f32 0.0, %v433
          %435 = vmatmul.f32.gmra.mxu0 %v172
          %v436 = vpop.f32.mrf.mxu0
          %v437 = vadd.f32 0.0, %v436
          %438 = vmatmul.f32.gmra.mxu0 %v175
          %v439 = vpop.f32.mrf.mxu0
          %v440 = vadd.f32 0.0, %v439
          %441 = vmatmul.f32.gmra.mxu0 %v178
          %v442 = vpop.f32.mrf.mxu0
          %v443 = vadd.f32 0.0, %v442
          %444 = vmatmul.f32.gmra.mxu0 %v181
          %v445 = vpop.f32.mrf.mxu0
          %v446 = vadd.f32 0.0, %v445
          %447 = vmatmul.f32.gmra.mxu0 %v184
          %v448 = vpop.f32.mrf.mxu0
          %v449 = vadd.f32 0.0, %v448
          %450 = vdwg.mxu0
          %vm451 = vcmp.lt.s32.totalorder %v228, 20
          %v452 = vsel %vm451, %v428, -1e+30
          %v453 = vsel %vm451, %v431, -1e+30
          %v454 = vsel %vm451, %v434, -1e+30
          %v455 = vsel %vm451, %v437, -1e+30
          %v456 = vsel %vm451, %v440, -1e+30
          %v457 = vsel %vm451, %v443, -1e+30
          %v458 = vsel %vm451, %v446, -1e+30
          %v459 = vsel %vm451, %v449, -1e+30
          %460 = vmax.xlane.f32.xlu0 %v452
          %v461 = vpop.xlane.xlu0 %460
          %462 = vmax.xlane.f32.xlu0 %v453
          %v463 = vpop.xlane.xlu0 %462
          %464 = vmax.xlane.f32.xlu0 %v454
          %v465 = vpop.xlane.xlu0 %464
          %466 = vmax.xlane.f32.xlu0 %v455
          %v467 = vpop.xlane.xlu0 %466
          %468 = vmax.xlane.f32.xlu0 %v456
          %v469 = vpop.xlane.xlu0 %468
          %470 = vmax.xlane.f32.xlu0 %v457
          %v471 = vpop.xlane.xlu0 %470
          %472 = vmax.xlane.f32.xlu0 %v458
          %v473 = vpop.xlane.xlu0 %472
          %474 = vmax.xlane.f32.xlu0 %v459
          %v475 = vpop.xlane.xlu0 %474
          %v476 = vsub.f32 %v452, %v461
          %v477 = vsub.f32 %v453, %v463
          %v478 = vsub.f32 %v454, %v465
          %v479 = vsub.f32 %v455, %v467
          %v480 = vsub.f32 %v456, %v469
          %v481 = vsub.f32 %v457, %v471
          %v482 = vsub.f32 %v458, %v473
          %v483 = vsub.f32 %v459, %v475
          %v484 = vmul.f32 %v476, 1.442695
          %v485 = vpow.pop %v484
          %v486 = vmul.f32 %v477, 1.442695
          %v487 = vpow.pop %v486
          %v488 = vmul.f32 %v478, 1.442695
          %v489 = vpow.pop %v488
          %v490 = vmul.f32 %v479, 1.442695
          %v491 = vpow.pop %v490
          %v492 = vmul.f32 %v480, 1.442695
          %v493 = vpow.pop %v492
          %v494 = vmul.f32 %v481, 1.442695
          %v495 = vpow.pop %v494
          %v496 = vmul.f32 %v482, 1.442695
          %v497 = vpow.pop %v496
          %v498 = vmul.f32 %v483, 1.442695
          %v499 = vpow.pop %v498
          %v500 = vsel %vm451, %v485, 0.0
          %v501 = vsel %vm451, %v487, 0.0
          %v502 = vsel %vm451, %v489, 0.0
          %v503 = vsel %vm451, %v491, 0.0
          %v504 = vsel %vm451, %v493, 0.0
          %v505 = vsel %vm451, %v495, 0.0
          %v506 = vsel %vm451, %v497, 0.0
          %v507 = vsel %vm451, %v499, 0.0
          %v508 = vmul.f32 %v500, %v500
          %v509 = vmul.f32 %v501, %v501
          %v510 = vmul.f32 %v502, %v502
          %v511 = vmul.f32 %v503, %v503
          %v512 = vmul.f32 %v504, %v504
          %v513 = vmul.f32 %v505, %v505
          %v514 = vmul.f32 %v506, %v506
          %v515 = vmul.f32 %v507, %v507
          %516 = vadd.xlane.f32.xlu0 %v508
          %v517 = vpop.xlane.xlu0 %516
          %518 = vadd.xlane.f32.xlu0 %v509
          %v519 = vpop.xlane.xlu0 %518
          %520 = vadd.xlane.f32.xlu0 %v510
          %v521 = vpop.xlane.xlu0 %520
          %522 = vadd.xlane.f32.xlu0 %v511
          %v523 = vpop.xlane.xlu0 %522
          %524 = vadd.xlane.f32.xlu0 %v512
          %v525 = vpop.xlane.xlu0 %524
          %526 = vadd.xlane.f32.xlu0 %v513
          %v527 = vpop.xlane.xlu0 %526
          %528 = vadd.xlane.f32.xlu0 %v514
          %v529 = vpop.xlane.xlu0 %528
          %530 = vadd.xlane.f32.xlu0 %v515
          %v531 = vpop.xlane.xlu0 %530
          %v532 = vrsqrt.pop %v517
          %v533 = vmul.f32 %v532, %v517
          %v534 = vmul.f32 %v533, %v532
          %v535 = vmul.f32 0.5, %v534
          %v536 = vsub.f32 1.5, %v535
          %v537 = vmul.f32 %v532, %v536
          %vm538 = vweird.f32 %v517
          %vm539 = vweird.f32 %v532
          %vm540 = vmor %vm538, %vm539
          %v541 = vsel %vm540, %v532, %v537
          %v542 = vrsqrt.pop %v519
          %v543 = vmul.f32 %v542, %v519
          %v544 = vmul.f32 %v543, %v542
          %v545 = vmul.f32 0.5, %v544
          %v546 = vsub.f32 1.5, %v545
          %v547 = vmul.f32 %v542, %v546
          %vm548 = vweird.f32 %v519
          %vm549 = vweird.f32 %v542
          %vm550 = vmor %vm548, %vm549
          %v551 = vsel %vm550, %v542, %v547
          %v552 = vrsqrt.pop %v521
          %v553 = vmul.f32 %v552, %v521
          %v554 = vmul.f32 %v553, %v552
          %v555 = vmul.f32 0.5, %v554
          %v556 = vsub.f32 1.5, %v555
          %v557 = vmul.f32 %v552, %v556
          %vm558 = vweird.f32 %v521
          %vm559 = vweird.f32 %v552
          %vm560 = vmor %vm558, %vm559
          %v561 = vsel %vm560, %v552, %v557
          %v562 = vrsqrt.pop %v523
          %v563 = vmul.f32 %v562, %v523
          %v564 = vmul.f32 %v563, %v562
          %v565 = vmul.f32 0.5, %v564
          %v566 = vsub.f32 1.5, %v565
          %v567 = vmul.f32 %v562, %v566
          %vm568 = vweird.f32 %v523
          %vm569 = vweird.f32 %v562
          %vm570 = vmor %vm568, %vm569
          %v571 = vsel %vm570, %v562, %v567
          %v572 = vrsqrt.pop %v525
          %v573 = vmul.f32 %v572, %v525
          %v574 = vmul.f32 %v573, %v572
          %v575 = vmul.f32 0.5, %v574
          %v576 = vsub.f32 1.5, %v575
          %v577 = vmul.f32 %v572, %v576
          %vm578 = vweird.f32 %v525
          %vm579 = vweird.f32 %v572
          %vm580 = vmor %vm578, %vm579
          %v581 = vsel %vm580, %v572, %v577
          %v582 = vrsqrt.pop %v527
          %v583 = vmul.f32 %v582, %v527
          %v584 = vmul.f32 %v583, %v582
          %v585 = vmul.f32 0.5, %v584
          %v586 = vsub.f32 1.5, %v585
          %v587 = vmul.f32 %v582, %v586
          %vm588 = vweird.f32 %v527
          %vm589 = vweird.f32 %v582
          %vm590 = vmor %vm588, %vm589
          %v591 = vsel %vm590, %v582, %v587
          %v592 = vrsqrt.pop %v529
          %v593 = vmul.f32 %v592, %v529
          %v594 = vmul.f32 %v593, %v592
          %v595 = vmul.f32 0.5, %v594
          %v596 = vsub.f32 1.5, %v595
          %v597 = vmul.f32 %v592, %v596
          %vm598 = vweird.f32 %v529
          %vm599 = vweird.f32 %v592
          %vm600 = vmor %vm598, %vm599
          %v601 = vsel %vm600, %v592, %v597
          %v602 = vrsqrt.pop %v531
          %v603 = vmul.f32 %v602, %v531
          %v604 = vmul.f32 %v603, %v602
          %v605 = vmul.f32 0.5, %v604
          %v606 = vsub.f32 1.5, %v605
          %v607 = vmul.f32 %v602, %v606
          %vm608 = vweird.f32 %v531
          %vm609 = vweird.f32 %v602
          %vm610 = vmor %vm608, %vm609
          %v611 = vsel %vm610, %v602, %v607
          %v612 = vmul.f32 %v500, %v541
          %v613 = vmul.f32 %v501, %v551
          %v614 = vmul.f32 %v502, %v561
          %v615 = vmul.f32 %v503, %v571
          %v616 = vmul.f32 %v504, %v581
          %v617 = vmul.f32 %v505, %v591
          %v618 = vmul.f32 %v506, %v601
          %v619 = vmul.f32 %v507, %v611
          %620 = vst [vmem:[#allocation3] sm:$0xff] %v612
          %621 = vst [vmem:[#allocation3 + $0x8] sm:$0xff] %v613
          %622 = vst [vmem:[#allocation3 + $0x10] sm:$0xff] %v614
          %623 = vst [vmem:[#allocation3 + $0x18] sm:$0xff] %v615
          %624 = vst [vmem:[#allocation3 + $0x20] sm:$0xff] %v616
          %625 = vst [vmem:[#allocation3 + $0x28] sm:$0xff] %v617
          %626 = vst [vmem:[#allocation3 + $0x30] sm:$0xff] %v618
          %627 = vst [vmem:[#allocation3 + $0x38] sm:$0xff] %v619
          %vm628 = vcmask 0
          %629 = vst.msk [vmem:[#allocation4] sm:$0x1] %vm628, 0.0
        $region36: #{tpu_custom_call.1} parent=31 // pred_fallthru
          _
        %s630 = smul.u32 %s15, 32
        %s631 = scalar_lea.vmem [#allocation2], %s630
        %v632 = vld [vmem:[%s631] sm:$0xff]
        %v633 = vld [vmem:[%s631 + $0x8] sm:$0xff]
        %v634 = vld [vmem:[%s631 + $0x10] sm:$0xff]
        %v635 = vld [vmem:[%s631 + $0x18] sm:$0xff]
        %s636 = scalar_lea.vmem [#allocation3], %s630
        %v637 = vld [vmem:[%s636] sm:$0xff]
        %v638 = vld [vmem:[%s636 + $0x8] sm:$0xff]
        %v639 = vld [vmem:[%s636 + $0x10] sm:$0xff]
        %v640 = vld [vmem:[%s636 + $0x18] sm:$0xff]
        %v641 = vld [vmem:[#allocation2] sm:$0xff]
        %v642 = vld [vmem:[#allocation2 + $0x8] sm:$0xff]
        %v643 = vld [vmem:[#allocation2 + $0x10] sm:$0xff]
        %v644 = vld [vmem:[#allocation2 + $0x18] sm:$0xff]
        %v645 = vld [vmem:[#allocation2 + $0x20] sm:$0xff]
        %v646 = vld [vmem:[#allocation2 + $0x28] sm:$0xff]
        %v647 = vld [vmem:[#allocation2 + $0x30] sm:$0xff]
        %v648 = vld [vmem:[#allocation2 + $0x38] sm:$0xff]
        %649 = vmatpush.xpose.msra.mxu0 0.0
        %650 = vmatpush.xpose.msra.mxu0 0.0
        %651 = vmatpush.xpose.msra.mxu0 0.0
        %652 = vmatpush.xpose.msra.mxu0 0.0
        %653 = vmatpush.xpose.msra.mxu0 0.0
        %654 = vmatpush.xpose.msra.mxu0 0.0
        %655 = vmatpush.xpose.msra.mxu0 0.0
        %656 = vmatpush.xpose.msra.mxu0 0.0
        %657 = vmatpush.xpose.msra.mxu0 %v648
        %658 = vmatpush.xpose.msra.mxu0 %v647
        %659 = vmatpush.xpose.msra.mxu0 %v646
        %660 = vmatpush.xpose.msra.mxu0 %v645
        %661 = vmatpush.xpose.msra.mxu0 %v644
        %662 = vmatpush.xpose.msra.mxu0 %v643
        %663 = vmatpush.xpose.msra.mxu0 %v642
        %664 = vmatpush.xpose.msra.mxu0 %v641
        %665 = vmatmul.f32.gmra.mxu0 %v632
        %v666 = vpop.f32.mrf.mxu0
        %v667 = vadd.f32 0.0, %v666
        %668 = vmatmul.f32.gmra.mxu0 %v633
        %v669 = vpop.f32.mrf.mxu0
        %v670 = vadd.f32 0.0, %v669
        %671 = vmatmul.f32.gmra.mxu0 %v634
        %v672 = vpop.f32.mrf.mxu0
        %v673 = vadd.f32 0.0, %v672
        %674 = vmatmul.f32.gmra.mxu0 %v635
        %v675 = vpop.f32.mrf.mxu0
        %v676 = vadd.f32 0.0, %v675
        %677 = vdwg.mxu0
        %v678 = vld [vmem:[#allocation3] sm:$0xff]
        %v679 = vld [vmem:[#allocation3 + $0x8] sm:$0xff]
        %v680 = vld [vmem:[#allocation3 + $0x10] sm:$0xff]
        %v681 = vld [vmem:[#allocation3 + $0x18] sm:$0xff]
        %v682 = vld [vmem:[#allocation3 + $0x20] sm:$0xff]
        %v683 = vld [vmem:[#allocation3 + $0x28] sm:$0xff]
        %v684 = vld [vmem:[#allocation3 + $0x30] sm:$0xff]
        %v685 = vld [vmem:[#allocation3 + $0x38] sm:$0xff]
        %686 = vmatpush.xpose.msra.mxu0 0.0
        %687 = vmatpush.xpose.msra.mxu0 0.0
        %688 = vmatpush.xpose.msra.mxu0 0.0
        %689 = vmatpush.xpose.msra.mxu0 0.0
        %690 = vmatpush.xpose.msra.mxu0 0.0
        %691 = vmatpush.xpose.msra.mxu0 0.0
        %692 = vmatpush.xpose.msra.mxu0 0.0
        %693 = vmatpush.xpose.msra.mxu0 0.0
        %694 = vmatpush.xpose.msra.mxu0 %v685
        %695 = vmatpush.xpose.msra.mxu0 %v684
        %696 = vmatpush.xpose.msra.mxu0 %v683
        %697 = vmatpush.xpose.msra.mxu0 %v682
        %698 = vmatpush.xpose.msra.mxu0 %v681
        %699 = vmatpush.xpose.msra.mxu0 %v680
        %700 = vmatpush.xpose.msra.mxu0 %v679
        %701 = vmatpush.xpose.msra.mxu0 %v678
        %702 = vmatmul.f32.gmra.mxu0 %v637
        %v703 = vpop.f32.mrf.mxu0
        %v704 = vadd.f32 0.0, %v703
        %705 = vmatmul.f32.gmra.mxu0 %v638
        %v706 = vpop.f32.mrf.mxu0
        %v707 = vadd.f32 0.0, %v706
        %708 = vmatmul.f32.gmra.mxu0 %v639
        %v709 = vpop.f32.mrf.mxu0
        %v710 = vadd.f32 0.0, %v709
        %711 = vmatmul.f32.gmra.mxu0 %v640
        %v712 = vpop.f32.mrf.mxu0
        %v713 = vadd.f32 0.0, %v712
        %714 = vdwg.mxu0
        %v715 = vsub.f32 %v704, %v667
        %v716 = vsub.f32 %v707, %v670
        %v717 = vsub.f32 %v710, %v673
        %v718 = vsub.f32 %v713, %v676
        %v719 = vadd.f32 %v715, 1e-06
        %v720 = vadd.f32 %v716, 1e-06
        %v721 = vadd.f32 %v717, 1e-06
        %v722 = vadd.f32 %v718, 1e-06
        %v723 = vlaneseq
        %v724 = vshrl.u32 %v723, 7
        %v725 = vadd.s32 %v724, 8
        %v726 = vadd.s32 %v724, 16
        %v727 = vadd.s32 %v724, 24
        %v728 = vstv %s630
        %v729 = vadd.s32 %v728, %v724
        %v730 = vadd.s32 %v728, %v725
        %v731 = vadd.s32 %v728, %v726
        %v732 = vadd.s32 %v728, %v727
        %v733 = vlaneseq
        %v734 = vand.u32 %v733, 127
        %vm735 = vcmp.lt.s32.totalorder %v729, 50
        %vm736 = vcmp.lt.s32.totalorder %v730, 50
        %vm737 = vcmp.lt.s32.totalorder %v731, 50
        %vm738 = vcmp.lt.s32.totalorder %v732, 50
        %vm739 = vcmp.lt.s32.totalorder %v734, 50
        %vm740 = vmand %vm735, %vm739
        %vm741 = vmand %vm736, %vm739
        %vm742 = vmand %vm737, %vm739
        %vm743 = vmand %vm738, %vm739
        %v744 = vld [vmem:[#allocation4] sm:$0x1]
        %v745 = vmul.f32 %v719, %v719
        %v746 = vmul.f32 %v720, %v720
        %v747 = vmul.f32 %v721, %v721
        %v748 = vmul.f32 %v722, %v722
        %v749 = vsel %vm740, %v745, 0.0
        %v750 = vsel %vm741, %v746, 0.0
        %v751 = vsel %vm742, %v747, 0.0
        %v752 = vsel %vm743, %v748, 0.0
        %vm753 = vcmask 523264
        %v754 = vsel %vm753, %v749, 0.0
        %v755 = vsel %vm753, %v750, 0.0
        %v756 = vadd.f32 %v754, %v755
        %v757 = vsel %vm753, %v751, 0.0
        %v758 = vadd.f32 %v756, %v757
        %v759 = vsel %vm753, %v752, 0.0
        %v760 = vadd.f32 %v758, %v759
        %761 = vadd.xlane.f32.xlu0 %v760
        %v762 = vpop.xlane.xlu0 %761
        %v763 = vrot.slane %v762, 4
        %v764 = vadd.f32 %v762, %v763
        %v765 = vrot.slane %v764, 2
        %v766 = vadd.f32 %v764, %v765
        %v767 = vrot.slane %v766, 1
        %v768 = vadd.f32 %v766, %v767
        %s769 = vtos %v768
        %v770 = vstv %s769
        %v771 = vadd.f32 %v744, %v770
        %vm772 = vcmask 0
        %773 = vst.msk [vmem:[#allocation4] sm:$0x1] %vm772, %v771
        %p774 = scmp.eq.s32.totalorder %s15, 1
        // Predicated region
        $region37: #{tpu_custom_call.1} parent=31 // pred_check
          %p775 = pneg %p774
        $region38: #{tpu_custom_call.1} parent=31 // pred_check_branch
          %777 = sbr.rel (%p775) target = $region40
        $region39: #{tpu_custom_call.1} parent=31 // pred_region
          %v778 = vld [vmem:[#allocation4] sm:$0x1]
          %v779 = vmul.f32 %v778, 0.02
          %780 = vst.msk [vmem:[#allocation5] sm:$0x1] %vm772, %v779
        $region40: #{tpu_custom_call.1} parent=31 // pred_fallthru
          _
        // Predicated region
        $region41: #{tpu_custom_call.1} parent=31 // pred_check
          %p781 = pneg %p91
        $region42: #{tpu_custom_call.1} parent=31 // pred_check_branch
          %783 = sbr.rel (%p781) target = $region44
        $region43: #{tpu_custom_call.1} parent=31 // pred_region
          %785 = vsyncadd [#allocation6], 0
          %s787 = sshll.u32 [#allocation5], 4
          %s788 = int_to_ptr.vmem [resolvable:$true] %s787
          %s789 = sshll.u32 %s3, 4
          %s790 = int_to_ptr.hbm [resolvable:$true] %s789
          %792 = dma.vmem_to_hbm [thread:$0]  %s788, 16, %s790, [#allocation6]
        $region44: #{tpu_custom_call.1} parent=31 // pred_fallthru
          _
        // Predicated region
        $region45: #{tpu_custom_call.1} parent=31 // pred_check
          %p793 = pneg %p91
        $region46: #{tpu_custom_call.1} parent=31 // pred_check_branch
          %795 = sbr.rel (%p793) target = $region48
        $region47: #{tpu_custom_call.1} parent=31 // pred_region
          %797 = dma.done [#allocation6], 16
        $region48: #{tpu_custom_call.1} parent=31 // pred_fallthru
          _
      $region32: #{tpu_custom_call.1} parent=5 // pred_fallthru
        _
      %p798 = scmp.le.s32.totalorder 2, %s10
      // Predicated region
      $region49: #{tpu_custom_call.1} parent=5 // pred_check
        %p799 = pneg %p798
      $region50: #{tpu_custom_call.1} parent=5 // pred_check_branch
        %801 = sbr.rel (%p799) target = $region52
      $region51: #{tpu_custom_call.1} parent=5 // pred_region
        %s802 = ssub.s32 %s10, 2
      $region52: #{tpu_custom_call.1} parent=5 // pred_fallthru
        _
    $region6: #{tpu_custom_call.1} parent=1 // loop_footer
      %s14 = sadd.s32 1, %s10
    $region7: #{tpu_custom_call.1} parent=1 // loop_footer_branch
      %9 = sbr.rel target = $region3
    $region8: #{tpu_custom_call.1} parent=1 // loop_exit
      _
    %803 = vsyncpa [#allocation6], 1
    %s804 = scalar_lea.sflag [#allocation6], 1
    %805 = vsyncpa %s804, 1

</llo_original>
